<compile_context>
chip_gen: v5e
topology: v5e:2x2
jax: 0.10.0
libtpu: 0.0.40
codegen_flags: <defaults>
</compile_context>

<pallas_src>
import functools

import jax
import jax.numpy as jnp
from jax.experimental import pallas as pl
from jax.experimental.pallas import tpu as pltpu


def _round_up(v, m):
    return (v + m - 1) // m * m


def ssconv_kernel(x_ref, wpc_ref, bpc_ref, wdw_ref, bdw_ref, o_ref, ybuf_ref,
                  *, W, K, neg_slope, use_mxu):
    # x_ref:    (C_in, N)        one batch element, N = H*W flattened spatial
    # wpc_ref:  (C_out, C_in)    1x1 conv weight with BN scale folded in
    # bpc_ref:  (C_out, 1)       folded BN shift bias  (= wpc @ shift)
    # wdw_ref:  (C_out, K*K)     depthwise conv weight, taps row-major
    # bdw_ref:  (C_out, 1)       depthwise conv bias
    # o_ref:    (C_out, N)
    # ybuf_ref: (C_out, N+2*P0)  VMEM scratch, zero margins of width P0
    C_in, N = x_ref.shape
    C_out = o_ref.shape[0]
    pad = K // 2
    margin = pad * W + pad                       # zero lanes actually needed
    P0 = _round_up(margin, 128) if margin > 0 else 0   # aligned left margin

    # --- pointwise (1x1) conv, BN already folded into weights/bias ---------
    if use_mxu:
        y = jnp.dot(wpc_ref[...], x_ref[...],
                    preferred_element_type=jnp.float32)
    else:
        # Tiny contraction: unrolled VPU broadcast-MACs (skip MXU latency).
        wpc = wpc_ref[...]
        x = x_ref[...]
        y = wpc[:, 0:1] * x[0:1, :]
        for ci in range(1, C_in):
            y = y + wpc[:, ci:ci + 1] * x[ci:ci + 1, :]
    y = y + bpc_ref[...]                          # folded BN bias
    y = jnp.maximum(y, neg_slope * y)             # LeakyReLU #1

    # --- stage pointwise output into the zero-margined scratch -------------
    if margin > 0:
        zpad = jnp.zeros((C_out, P0), jnp.float32)
        ybuf_ref[:, 0:P0] = zpad                  # aligned margin stores
        ybuf_ref[:, P0 + N:P0 + N + P0] = zpad
    ybuf_ref[:, P0:P0 + N] = y                    # aligned (P0 % 128 == 0)

    # --- depthwise KxK conv on the flattened spatial axis -------------------
    w_all = wdw_ref[...]                          # hoisted: single VMEM load
    col = jax.lax.broadcasted_iota(jnp.int32, (1, N), 1) % W

    acc = None
    for dw in range(-pad, pad + 1):
        inner = None
        for dh in range(-pad, pad + 1):
            t = (dh + pad) * K + (dw + pad)       # tap index (row-major KxK)
            s = dh * W + dw                       # lane offset of neighbour
            tap = ybuf_ref[:, P0 + s:P0 + s + N]  # static slice
            term = w_all[:, t:t + 1] * tap
            inner = term if inner is None else inner + term
        # One edge mask per dw group (same mask for every dh).
        if dw < 0:
            inner = jnp.where(col >= -dw, inner, 0.0)
        elif dw > 0:
            inner = jnp.where(col < W - dw, inner, 0.0)
        acc = inner if acc is None else acc + inner

    out = acc + bdw_ref[...]
    out = jnp.maximum(out, neg_slope * out)       # LeakyReLU #2
    o_ref[...] = out.astype(o_ref.dtype)


def ssconv_forward(x, bn_gamma, bn_beta, bn_mean, bn_var,
                   w_point, w_depth, b_depth,
                   *, eps=1e-5, negative_slope=0.01, force_mxu=None):
    """x: (B, C_in, H, W).  Returns (B, C_out, H, W)."""
    # TODO(synk): training-mode BatchNorm (batch statistics + running-stat
    # update) is not implemented; eval-mode affine BN (running stats) is used.
    B, C_in, H, W = x.shape
    C_out = w_point.shape[0]
    K = w_depth.shape[-1]
    assert K % 2 == 1, "SSConv Pallas kernel assumes odd depthwise kernel size"
    assert 0.0 <= negative_slope < 1.0, "maximum-form LeakyReLU needs slope in [0,1)"
    N = H * W
    pad = K // 2
    margin = pad * W + pad
    P0 = _round_up(margin, 128) if margin > 0 else 0
    itemsize = jnp.dtype(x.dtype).itemsize

    # free row-major view: (B, C_in, H, W) -> (B, C_in, N)
    x_flat = x.reshape(B, C_in, N)

    # Fold eval-mode BN affine into the 1x1 conv (tiny parameter math).
    scale = bn_gamma.astype(jnp.float32) / jnp.sqrt(bn_var.astype(jnp.float32) + eps)
    shift = bn_beta.astype(jnp.float32) - bn_mean.astype(jnp.float32) * scale
    wpc0 = w_point.reshape(C_out, C_in).astype(jnp.float32)   # (C_out,C_in,1,1)
    wpc = wpc0 * scale[None, :]                                # folded weight
    bpc = (wpc0 @ shift).reshape(C_out, 1)                     # folded bias
    wdw = w_depth.reshape(C_out, K * K).astype(jnp.float32)    # (C_out,1,K,K)
    bdw = b_depth.reshape(C_out, 1).astype(jnp.float32)

    use_mxu = (C_in > 8) if force_mxu is None else bool(force_mxu)
    kernel = functools.partial(ssconv_kernel, W=W, K=K,
                               neg_slope=float(negative_slope),
                               use_mxu=use_mxu)

    # Generation-aware VMEM budget (v7x has 64 MiB/TC, v5e/v6e 128 MiB).
    try:
        vmem_cap = int(pltpu.get_tpu_info().vmem_capacity_bytes)
    except Exception:
        vmem_cap = 64 * 2 ** 20            # conservative fallback (v7x per-TC)
    scratch_bytes = 4 * C_out * (N + 2 * P0)
    work_bytes = (2 * itemsize * (C_in + C_out) * N        # 2x-buffered blocks
                  + scratch_bytes
                  + 4 * 4 * C_out * N                       # in-flight f32 temps
                  + 4 * (C_out * C_in + C_out * K * K + 2 * C_out))
    vmem_limit = int(min(max(2 * work_bytes, 16 * 2 ** 20), int(0.75 * vmem_cap)))
    # TODO(synk): for large images where work_bytes exceeds the VMEM budget,
    # add a spatial row-tile grid axis with a pad-row halo instead of
    # whole-image (C, N) blocks.

    flops = B * N * (2 * C_out * C_in + 2 * K * K * C_out + 6 * C_out)
    bytes_accessed = (itemsize * B * (C_in + C_out) * N
                      + 4 * (C_out * C_in + C_out * K * K + 2 * C_out))

    out = pl.pallas_call(
        kernel,
        out_shape=jax.ShapeDtypeStruct((B, C_out, N), x.dtype),
        grid=(B,),
        in_specs=[
            pl.BlockSpec((None, C_in, N), lambda b: (b, 0, 0)),   # x (batch-squeezed)
            pl.BlockSpec((C_out, C_in), lambda b: (0, 0)),        # folded 1x1 weight
            pl.BlockSpec((C_out, 1), lambda b: (0, 0)),           # folded 1x1 bias
            pl.BlockSpec((C_out, K * K), lambda b: (0, 0)),       # dw weight
            pl.BlockSpec((C_out, 1), lambda b: (0, 0)),           # dw bias
        ],
        out_specs=pl.BlockSpec((None, C_out, N), lambda b: (b, 0, 0)),
        scratch_shapes=[pltpu.VMEM((C_out, N + 2 * P0), jnp.float32)],
        compiler_params=pltpu.CompilerParams(
            dimension_semantics=("parallel",),
            vmem_limit_bytes=vmem_limit),
        cost_estimate=pl.CostEstimate(flops=flops, transcendentals=0,
                                      bytes_accessed=bytes_accessed),
    )(x_flat, wpc, bpc, wdw, bdw)

    return out.reshape(B, C_out, H, W)


def ssconv_reference(x, bn_gamma, bn_beta, bn_mean, bn_var,
                     w_point, w_depth, b_depth,
                     *, eps=1e-5, negative_slope=0.01):
    """Pure-JAX reference mirroring the PyTorch forward (eval-mode BN)."""
    xf = x.astype(jnp.float32)
    scale = bn_gamma / jnp.sqrt(bn_var + eps)
    shift = bn_beta - bn_mean * scale
    out = xf * scale[None, :, None, None] + shift[None, :, None, None]
    # 1x1 pointwise conv, no bias
    out = jax.lax.conv_general_dilated(
        out, w_point.astype(jnp.float32), window_strides=(1, 1),
        padding="VALID", dimension_numbers=("NCHW", "OIHW", "NCHW"))
    out = jnp.where(out >= 0, out, negative_slope * out)
    # depthwise KxK conv with bias
    C_out = w_depth.shape[0]
    pad = w_depth.shape[-1] // 2
    out = jax.lax.conv_general_dilated(
        out, w_depth.astype(jnp.float32), window_strides=(1, 1),
        padding=((pad, pad), (pad, pad)),
        dimension_numbers=("NCHW", "OIHW", "NCHW"),
        feature_group_count=C_out)
    out = out + b_depth[None, :, None, None]
    out = jnp.where(out >= 0, out, negative_slope * out)
    return out


if __name__ == "__main__":
    key = jax.random.PRNGKey(0)
    ks = jax.random.split(key, 8)

    B, C_in, C_out, H, W, K = 2, 4, 8, 16, 16, 3

    x = jax.random.normal(ks[0], (B, C_in, H, W), dtype=jnp.float32)
    w_point = 0.3 * jax.random.normal(ks[1], (C_out, C_in, 1, 1), jnp.float32)
    w_depth = 0.3 * jax.random.normal(ks[2], (C_out, 1, K, K), jnp.float32)
    b_depth = 0.1 * jax.random.normal(ks[3], (C_out,), jnp.float32)
    bn_gamma = 1.0 + 0.1 * jax.random.normal(ks[4], (C_in,), jnp.float32)
    bn_beta = 0.1 * jax.random.normal(ks[5], (C_in,), jnp.float32)
    bn_mean = 0.1 * jax.random.normal(ks[6], (C_in,), jnp.float32)
    bn_var = jax.random.uniform(ks[7], (C_in,), jnp.float32,
                                minval=0.5, maxval=1.5)

    y_ref = ssconv_reference(x, bn_gamma, bn_beta, bn_mean, bn_var,
                             w_point, w_depth, b_depth)

    # Default path: C_in=4 <= 8 -> unrolled VPU 1x1 conv.
    y_vpu = ssconv_forward(x, bn_gamma, bn_beta, bn_mean, bn_var,
                           w_point, w_depth, b_depth)
    y_vpu = jax.block_until_ready(y_vpu)
    assert y_vpu.shape == (B, C_out, H, W)
    err_vpu = float(jnp.max(jnp.abs(y_vpu - y_ref)))
    assert jnp.allclose(y_vpu, y_ref, atol=1e-4, rtol=1e-4), err_vpu

    # MXU path exercised on the same shapes (large-C_in code path).
    y_mxu = ssconv_forward(x, bn_gamma, bn_beta, bn_mean, bn_var,
                           w_point, w_depth, b_depth, force_mxu=True)
    y_mxu = jax.block_until_ready(y_mxu)
    err_mxu = float(jnp.max(jnp.abs(y_mxu - y_ref)))
    assert jnp.allclose(y_mxu, y_ref, atol=1e-4, rtol=1e-4), err_mxu

    print("KERNEL_OK")
</pallas_src>

<mosaic_0001>
module attributes {stable_mosaic.version = 11 : i64} {
  func.func @ssconv_kernel(%arg0: i32, %arg1: memref<1x4x256xf32, #tpu.memory_space<vmem>>, %arg2: memref<8x4xf32, #tpu.memory_space<vmem>>, %arg3: memref<8x1xf32, #tpu.memory_space<vmem>>, %arg4: memref<8x9xf32, #tpu.memory_space<vmem>>, %arg5: memref<8x1xf32, #tpu.memory_space<vmem>>, %arg6: memref<1x8x256xf32, #tpu.memory_space<vmem>>, %arg7: memref<8x512xf32, #tpu.memory_space<vmem>>) attributes {dimension_semantics = [#tpu.dimension_semantics<parallel>], iteration_bounds = array<i64: 2>, scalar_prefetch = 0 : i64, scratch_operands = 1 : i64, tpu.core_type = #tpu.core_type<tc>, window_params = [{transform_indices = @transform_0, window_bounds = array<i64: 1, 4, 256>}, {pipeline_mode = #tpu.pipeline_mode<synchronous>, transform_indices = @transform_1, window_bounds = array<i64: 8, 4>}, {pipeline_mode = #tpu.pipeline_mode<synchronous>, transform_indices = @transform_2, window_bounds = array<i64: 8, 1>}, {pipeline_mode = #tpu.pipeline_mode<synchronous>, transform_indices = @transform_3, window_bounds = array<i64: 8, 9>}, {pipeline_mode = #tpu.pipeline_mode<synchronous>, transform_indices = @transform_4, window_bounds = array<i64: 8, 1>}, {transform_indices = @transform_5, window_bounds = array<i64: 1, 8, 256>}]} {
    %c0 = arith.constant 0 : index
    %c0_0 = arith.constant 0 : index
    %0 = vector.load %arg2[%c0, %c0_0] : memref<8x4xf32, #tpu.memory_space<vmem>>, vector<8x4xf32>
    %c0_1 = arith.constant 0 : index
    %c0_2 = arith.constant 0 : index
    %c0_3 = arith.constant 0 : index
    %1 = vector.load %arg1[%c0_1, %c0_2, %c0_3] : memref<1x4x256xf32, #tpu.memory_space<vmem>>, vector<1x4x256xf32>
    %2 = vector.shape_cast %1 : vector<1x4x256xf32> to vector<4x256xf32>
    %3 = vector.extract_strided_slice %0 {offsets = [0, 0], sizes = [8, 1], strides = [1, 1]} : vector<8x4xf32> to vector<8x1xf32>
    %4 = vector.extract_strided_slice %2 {offsets = [0, 0], sizes = [1, 256], strides = [1, 1]} : vector<4x256xf32> to vector<1x256xf32>
    %5 = vector.broadcast %3 : vector<8x1xf32> to vector<8x256xf32>
    %6 = vector.broadcast %4 : vector<1x256xf32> to vector<8x256xf32>
    %7 = arith.mulf %5, %6 : vector<8x256xf32>
    %8 = vector.extract_strided_slice %0 {offsets = [0, 1], sizes = [8, 1], strides = [1, 1]} : vector<8x4xf32> to vector<8x1xf32>
    %9 = vector.extract_strided_slice %2 {offsets = [1, 0], sizes = [1, 256], strides = [1, 1]} : vector<4x256xf32> to vector<1x256xf32>
    %10 = vector.broadcast %8 : vector<8x1xf32> to vector<8x256xf32>
    %11 = vector.broadcast %9 : vector<1x256xf32> to vector<8x256xf32>
    %12 = arith.mulf %10, %11 : vector<8x256xf32>
    %13 = arith.addf %7, %12 : vector<8x256xf32>
    %14 = vector.extract_strided_slice %0 {offsets = [0, 2], sizes = [8, 1], strides = [1, 1]} : vector<8x4xf32> to vector<8x1xf32>
    %15 = vector.extract_strided_slice %2 {offsets = [2, 0], sizes = [1, 256], strides = [1, 1]} : vector<4x256xf32> to vector<1x256xf32>
    %16 = vector.broadcast %14 : vector<8x1xf32> to vector<8x256xf32>
    %17 = vector.broadcast %15 : vector<1x256xf32> to vector<8x256xf32>
    %18 = arith.mulf %16, %17 : vector<8x256xf32>
    %19 = arith.addf %13, %18 : vector<8x256xf32>
    %20 = vector.extract_strided_slice %0 {offsets = [0, 3], sizes = [8, 1], strides = [1, 1]} : vector<8x4xf32> to vector<8x1xf32>
    %21 = vector.extract_strided_slice %2 {offsets = [3, 0], sizes = [1, 256], strides = [1, 1]} : vector<4x256xf32> to vector<1x256xf32>
    %22 = vector.broadcast %20 : vector<8x1xf32> to vector<8x256xf32>
    %23 = vector.broadcast %21 : vector<1x256xf32> to vector<8x256xf32>
    %24 = arith.mulf %22, %23 : vector<8x256xf32>
    %25 = arith.addf %19, %24 : vector<8x256xf32>
    %c0_4 = arith.constant 0 : index
    %c0_5 = arith.constant 0 : index
    %26 = vector.load %arg3[%c0_4, %c0_5] : memref<8x1xf32, #tpu.memory_space<vmem>>, vector<8x1xf32>
    %27 = vector.broadcast %26 : vector<8x1xf32> to vector<8x256xf32>
    %28 = arith.addf %25, %27 : vector<8x256xf32>
    %cst = arith.constant 0.00999999977 : f32
    %29 = vector.broadcast %cst : f32 to vector<8x256xf32>
    %30 = arith.mulf %29, %28 : vector<8x256xf32>
    %31 = arith.maximumf %28, %30 : vector<8x256xf32>
    %cst_6 = arith.constant 0.000000e+00 : f32
    %32 = vector.broadcast %cst_6 : f32 to vector<8x128xf32>
    %c0_7 = arith.constant 0 : index
    %c0_8 = arith.constant 0 : index
    %33 = vector.load %arg7[%c0_7, %c0_8] : memref<8x512xf32, #tpu.memory_space<vmem>>, vector<8x128xf32>
    tpu.vector_store %arg7[%c0_7, %c0_8], %32 {strides = array<i32>} : memref<8x512xf32, #tpu.memory_space<vmem>>, vector<8x128xf32>,
    %c0_9 = arith.constant 0 : index
    %c384 = arith.constant 384 : index
    %34 = vector.load %arg7[%c0_9, %c384] : memref<8x512xf32, #tpu.memory_space<vmem>>, vector<8x128xf32>
    tpu.vector_store %arg7[%c0_9, %c384], %32 {strides = array<i32>} : memref<8x512xf32, #tpu.memory_space<vmem>>, vector<8x128xf32>,
    %c0_10 = arith.constant 0 : index
    %c128 = arith.constant 128 : index
    %35 = vector.load %arg7[%c0_10, %c128] : memref<8x512xf32, #tpu.memory_space<vmem>>, vector<8x256xf32>
    tpu.vector_store %arg7[%c0_10, %c128], %31 {strides = array<i32>} : memref<8x512xf32, #tpu.memory_space<vmem>>, vector<8x256xf32>,
    %c0_11 = arith.constant 0 : index
    %c0_12 = arith.constant 0 : index
    %36 = vector.load %arg4[%c0_11, %c0_12] : memref<8x9xf32, #tpu.memory_space<vmem>>, vector<8x9xf32>
    %37 = tpu.iota {dimensions = array<i32: 1>} : vector<1x256xi32>
    %c16_i32 = arith.constant 16 : i32
    %c0_i32 = arith.constant 0 : i32
    %38 = arith.cmpi eq, %c16_i32, %c0_i32 : i32
    %c1_i32 = arith.constant 1 : i32
    %39 = arith.select %38, %c1_i32, %c16_i32 : i32
    %40 = vector.broadcast %39 : i32 to vector<1x256xi32>
    %41 = arith.remsi %37, %40 : vector<1x256xi32>
    %c0_i32_13 = arith.constant 0 : i32
    %42 = vector.broadcast %c0_i32_13 : i32 to vector<1x256xi32>
    %43 = arith.cmpi ne, %41, %42 : vector<1x256xi32>
    %c0_i32_14 = arith.constant 0 : i32
    %44 = vector.broadcast %c0_i32_14 : i32 to vector<1x256xi32>
    %45 = arith.cmpi slt, %41, %44 : vector<1x256xi32>
    %c0_i32_15 = arith.constant 0 : i32
    %46 = arith.cmpi slt, %39, %c0_i32_15 : i32
    %47 = vector.broadcast %46 : i1 to vector<1x256xi1>
    %48 = vector.broadcast %47 : vector<1x256xi1> to vector<1x256xi1>
    %49 = arith.xori %45, %48 : vector<1x256xi1>
    %50 = arith.andi %49, %43 : vector<1x256xi1>
    %51 = vector.broadcast %39 : i32 to vector<1x256xi32>
    %52 = arith.addi %41, %51 : vector<1x256xi32>
    %53 = arith.select %50, %52, %41 : vector<1x256xi1>, vector<1x256xi32>
    %c0_16 = arith.constant 0 : index
    %c111 = arith.constant 111 : index
    %54 = vector.load %arg7[%c0_16, %c111] : memref<8x512xf32, #tpu.memory_space<vmem>>, vector<8x256xf32>
    %55 = vector.extract_strided_slice %36 {offsets = [0, 0], sizes = [8, 1], strides = [1, 1]} : vector<8x9xf32> to vector<8x1xf32>
    %56 = vector.broadcast %55 : vector<8x1xf32> to vector<8x256xf32>
    %57 = arith.mulf %56, %54 : vector<8x256xf32>
    %c0_17 = arith.constant 0 : index
    %c127 = arith.constant 127 : index
    %58 = vector.load %arg7[%c0_17, %c127] : memref<8x512xf32, #tpu.memory_space<vmem>>, vector<8x256xf32>
    %59 = vector.extract_strided_slice %36 {offsets = [0, 3], sizes = [8, 1], strides = [1, 1]} : vector<8x9xf32> to vector<8x1xf32>
    %60 = vector.broadcast %59 : vector<8x1xf32> to vector<8x256xf32>
    %61 = arith.mulf %60, %58 : vector<8x256xf32>
    %62 = arith.addf %57, %61 : vector<8x256xf32>
    %c0_18 = arith.constant 0 : index
    %c143 = arith.constant 143 : index
    %63 = vector.load %arg7[%c0_18, %c143] : memref<8x512xf32, #tpu.memory_space<vmem>>, vector<8x256xf32>
    %64 = vector.extract_strided_slice %36 {offsets = [0, 6], sizes = [8, 1], strides = [1, 1]} : vector<8x9xf32> to vector<8x1xf32>
    %65 = vector.broadcast %64 : vector<8x1xf32> to vector<8x256xf32>
    %66 = arith.mulf %65, %63 : vector<8x256xf32>
    %67 = arith.addf %62, %66 : vector<8x256xf32>
    %c1_i32_19 = arith.constant 1 : i32
    %68 = vector.broadcast %c1_i32_19 : i32 to vector<1x256xi32>
    %69 = arith.cmpi sge, %53, %68 : vector<1x256xi32>
    %cst_20 = arith.constant 0.000000e+00 : f32
    %70 = vector.shape_cast %69 : vector<1x256xi1> to vector<1x256xi1>
    %71 = vector.broadcast %70 : vector<1x256xi1> to vector<8x256xi1>
    %72 = vector.broadcast %cst_20 : f32 to vector<8x256xf32>
    %73 = arith.select %71, %67, %72 : vector<8x256xi1>, vector<8x256xf32>
    %c0_21 = arith.constant 0 : index
    %c112 = arith.constant 112 : index
    %74 = vector.load %arg7[%c0_21, %c112] : memref<8x512xf32, #tpu.memory_space<vmem>>, vector<8x256xf32>
    %75 = vector.extract_strided_slice %36 {offsets = [0, 1], sizes = [8, 1], strides = [1, 1]} : vector<8x9xf32> to vector<8x1xf32>
    %76 = vector.broadcast %75 : vector<8x1xf32> to vector<8x256xf32>
    %77 = arith.mulf %76, %74 : vector<8x256xf32>
    %c0_22 = arith.constant 0 : index
    %c128_23 = arith.constant 128 : index
    %78 = vector.load %arg7[%c0_22, %c128_23] : memref<8x512xf32, #tpu.memory_space<vmem>>, vector<8x256xf32>
    %79 = vector.extract_strided_slice %36 {offsets = [0, 4], sizes = [8, 1], strides = [1, 1]} : vector<8x9xf32> to vector<8x1xf32>
    %80 = vector.broadcast %79 : vector<8x1xf32> to vector<8x256xf32>
    %81 = arith.mulf %80, %78 : vector<8x256xf32>
    %82 = arith.addf %77, %81 : vector<8x256xf32>
    %c0_24 = arith.constant 0 : index
    %c144 = arith.constant 144 : index
    %83 = vector.load %arg7[%c0_24, %c144] : memref<8x512xf32, #tpu.memory_space<vmem>>, vector<8x256xf32>
    %84 = vector.extract_strided_slice %36 {offsets = [0, 7], sizes = [8, 1], strides = [1, 1]} : vector<8x9xf32> to vector<8x1xf32>
    %85 = vector.broadcast %84 : vector<8x1xf32> to vector<8x256xf32>
    %86 = arith.mulf %85, %83 : vector<8x256xf32>
    %87 = arith.addf %82, %86 : vector<8x256xf32>
    %88 = arith.addf %73, %87 : vector<8x256xf32>
    %c0_25 = arith.constant 0 : index
    %c113 = arith.constant 113 : index
    %89 = vector.load %arg7[%c0_25, %c113] : memref<8x512xf32, #tpu.memory_space<vmem>>, vector<8x256xf32>
    %90 = vector.extract_strided_slice %36 {offsets = [0, 2], sizes = [8, 1], strides = [1, 1]} : vector<8x9xf32> to vector<8x1xf32>
    %91 = vector.broadcast %90 : vector<8x1xf32> to vector<8x256xf32>
    %92 = arith.mulf %91, %89 : vector<8x256xf32>
    %c0_26 = arith.constant 0 : index
    %c129 = arith.constant 129 : index
    %93 = vector.load %arg7[%c0_26, %c129] : memref<8x512xf32, #tpu.memory_space<vmem>>, vector<8x256xf32>
    %94 = vector.extract_strided_slice %36 {offsets = [0, 5], sizes = [8, 1], strides = [1, 1]} : vector<8x9xf32> to vector<8x1xf32>
    %95 = vector.broadcast %94 : vector<8x1xf32> to vector<8x256xf32>
    %96 = arith.mulf %95, %93 : vector<8x256xf32>
    %97 = arith.addf %92, %96 : vector<8x256xf32>
    %c0_27 = arith.constant 0 : index
    %c145 = arith.constant 145 : index
    %98 = vector.load %arg7[%c0_27, %c145] : memref<8x512xf32, #tpu.memory_space<vmem>>, vector<8x256xf32>
    %99 = vector.extract_strided_slice %36 {offsets = [0, 8], sizes = [8, 1], strides = [1, 1]} : vector<8x9xf32> to vector<8x1xf32>
    %100 = vector.broadcast %99 : vector<8x1xf32> to vector<8x256xf32>
    %101 = arith.mulf %100, %98 : vector<8x256xf32>
    %102 = arith.addf %97, %101 : vector<8x256xf32>
    %c15_i32 = arith.constant 15 : i32
    %103 = vector.broadcast %c15_i32 : i32 to vector<1x256xi32>
    %104 = arith.cmpi slt, %53, %103 : vector<1x256xi32>
    %cst_28 = arith.constant 0.000000e+00 : f32
    %105 = vector.shape_cast %104 : vector<1x256xi1> to vector<1x256xi1>
    %106 = vector.broadcast %105 : vector<1x256xi1> to vector<8x256xi1>
    %107 = vector.broadcast %cst_28 : f32 to vector<8x256xf32>
    %108 = arith.select %106, %102, %107 : vector<8x256xi1>, vector<8x256xf32>
    %109 = arith.addf %88, %108 : vector<8x256xf32>
    %c0_29 = arith.constant 0 : index
    %c0_30 = arith.constant 0 : index
    %110 = vector.load %arg5[%c0_29, %c0_30] : memref<8x1xf32, #tpu.memory_space<vmem>>, vector<8x1xf32>
    %111 = vector.broadcast %110 : vector<8x1xf32> to vector<8x256xf32>
    %112 = arith.addf %109, %111 : vector<8x256xf32>
    %cst_31 = arith.constant 0.00999999977 : f32
    %113 = vector.broadcast %cst_31 : f32 to vector<8x256xf32>
    %114 = arith.mulf %113, %112 : vector<8x256xf32>
    %115 = arith.maximumf %112, %114 : vector<8x256xf32>
    %c0_32 = arith.constant 0 : index
    %c0_33 = arith.constant 0 : index
    %c0_34 = arith.constant 0 : index
    %116 = vector.load %arg6[%c0_32, %c0_33, %c0_34] : memref<1x8x256xf32, #tpu.memory_space<vmem>>, vector<1x8x256xf32>
    %117 = vector.shape_cast %116 : vector<1x8x256xf32> to vector<8x256xf32>
    %118 = vector.shape_cast %115 : vector<8x256xf32> to vector<1x8x256xf32>
    tpu.vector_store %arg6[%c0_32, %c0_33, %c0_34], %118 {strides = array<i32>} : memref<1x8x256xf32, #tpu.memory_space<vmem>>, vector<1x8x256xf32>,
    return
  }
  func.func @transform_0(%arg0: i32) -> (i32, i32, i32) {
    %c0_i32 = arith.constant 0 : i32
    %c0_i32_0 = arith.constant 0 : i32
    %c0_i32_1 = arith.constant 0 : i32
    return %arg0, %c0_i32, %c0_i32_0 : i32, i32, i32
  }
  func.func @transform_1(%arg0: i32) -> (i32, i32) {
    %c0_i32 = arith.constant 0 : i32
    %c0_i32_0 = arith.constant 0 : i32
    %c0_i32_1 = arith.constant 0 : i32
    return %c0_i32, %c0_i32_0 : i32, i32
  }
  func.func @transform_2(%arg0: i32) -> (i32, i32) {
    %c0_i32 = arith.constant 0 : i32
    %c0_i32_0 = arith.constant 0 : i32
    %c0_i32_1 = arith.constant 0 : i32
    return %c0_i32, %c0_i32_0 : i32, i32
  }
  func.func @transform_3(%arg0: i32) -> (i32, i32) {
    %c0_i32 = arith.constant 0 : i32
    %c0_i32_0 = arith.constant 0 : i32
    %c0_i32_1 = arith.constant 0 : i32
    return %c0_i32, %c0_i32_0 : i32, i32
  }
  func.func @transform_4(%arg0: i32) -> (i32, i32) {
    %c0_i32 = arith.constant 0 : i32
    %c0_i32_0 = arith.constant 0 : i32
    %c0_i32_1 = arith.constant 0 : i32
    return %c0_i32, %c0_i32_0 : i32, i32
  }
  func.func @transform_5(%arg0: i32) -> (i32, i32, i32) {
    %c0_i32 = arith.constant 0 : i32
    %c0_i32_0 = arith.constant 0 : i32
    %c0_i32_1 = arith.constant 0 : i32
    return %arg0, %c0_i32, %c0_i32_0 : i32, i32, i32
  }
}

</mosaic_0001>

<llo_original>
// kernel: tpu_custom_call.1
$region0: #{tpu_custom_call.1}
  #allocation0 [shape = 'u32[]', space=smem, size = 0x4, offset = 0x4, fixed_abs, tag = 'smem constant byte address 0x4 - core index']
  #allocation1 [shape = 'u32[72,128]{1,0:T(1,128)}', space=vmem, size = 0x9000, scoped, tag = 'internal scratch']
  #allocation2 [shape = 'f32[8,512]{1,0:T(8,128)}', space=vmem, size = 0x4000, scoped, tag = 'scratch operand']
  %s0 = inlined_call_operand.vmem [shape: f32[2,4,256], index: 0, kind: input, shape index: {}]
  %s1 = inlined_call_operand.vmem [shape: f32[8,4], index: 1, kind: input, shape index: {}]
  %s2 = inlined_call_operand.vmem [shape: f32[8,1], index: 2, kind: input, shape index: {}]
  %s3 = inlined_call_operand.vmem [shape: f32[8,9], index: 3, kind: input, shape index: {}]
  %s4 = inlined_call_operand.vmem [shape: f32[8,1], index: 4, kind: input, shape index: {}]
  %s5 = inlined_call_operand.hbm [shape: f32[2,8,256], index: 5, kind: output, shape index: {}]
  %s6 = sld [smem:[#allocation0]]
  $region53: #{tpu_custom_call.1} parent=0
    _
  %s8 = ssub.s32 1, %s6
  %s9 = scalar_select 0, %s8, %s6
  $region1: #{tpu_custom_call.1} parent=0
    #allocation3 [shape = 'u8[16384]{0}', space=vmem, size = 0x4000, scoped, tag = 'output window, operand 0']
    #allocation4 [shape = 's32[2]{0}', space=sflag, size = 0x8, scoped, tag = 'scoped memory for tpu_custom_call.1']
    %10 = vsyncpa [#allocation4], 0
    %s11 = scalar_lea.sflag [#allocation4], 1
    %12 = vsyncpa %s11, 0
    loop: start=0, step=1, limit=4
    $region2: #{tpu_custom_call.1} parent=1 // loop_pre_header
      _
    $region3: #{tpu_custom_call.1} parent=1 // loop_header
      %s14 = sphi 0, %s18
      %p15 = scmp.ge.s32.totalorder %s14, 4
      %s24 = sphi 0, %s26
      %s27 = sphi 0, %s24
      %s28 = sphi 0, %s27
      %s44 = sphi 0, %s28
      %s48 = sphi 0, %s48
      %s50 = sphi 0, %s48
      %s51 = sphi 0, %s50
      %s65 = sphi 0, %s51
      %s69 = sphi 0, %s69
      %s71 = sphi 0, %s69
      %s72 = sphi 0, %s71
      %s86 = sphi 0, %s72
      %s90 = sphi 0, %s90
      %s92 = sphi 0, %s90
      %s93 = sphi 0, %s92
      %s107 = sphi 0, %s93
      %s111 = sphi 0, %s111
      %s113 = sphi 0, %s111
      %s114 = sphi 0, %s113
      %s128 = sphi 0, %s114
      %s134 = sphi 0, %s136
      %s137 = sphi 0, %s134
      %s138 = sphi 0, %s137
      %s154 = sphi 0, %s138
    $region4: #{tpu_custom_call.1} parent=1 // loop_header_branch
      %17 = sbr.rel (%p15) target = $region8
    $region5: #{tpu_custom_call.1} parent=1 // loop_body
      %s19 = ssub.s32 %s14, 1
      %s20 = ssub.s32 %s14, 2
      %s21 = sadd.s32 %s14, 1
      %s22 = ssub.s32 %s14, %s21
      %p23 = scmp.eq.s32.totalorder %s22, 0
      %s25 = sadd.s32 %s24, 1
      %s26 = scalar_select %p23, %s24, %s25
      %p29 = pneg %p23
      %p30 = scmp.eq.s32.totalorder %s14, 1
      %p31 = por %p29, %p30
      %p32 = scmp.ne.s32.totalorder %s24, %s27
      %p33 = scmp.eq.s32.totalorder %s14, 0
      %p34 = por %p32, %p33
      %p35 = scmp.ne.s32.totalorder %s24, %s27
      %p36 = scmp.eq.s32.totalorder %s19, 1
      %p37 = por %p35, %p36
      %p38 = scmp.ne.s32.totalorder %s27, %s28
      %p39 = scmp.eq.s32.totalorder %s19, 0
      %p40 = por %p38, %p39
      %p41 = scmp.ne.s32.totalorder %s27, %s28
      %p42 = scmp.eq.s32.totalorder %s20, 1
      %p43 = por %p41, %p42
      %p45 = scmp.ne.s32.totalorder %s28, %s44
      %p46 = scmp.eq.s32.totalorder %s20, 0
      %p47 = por %p45, %p46
      %s49 = sadd.s32 %s48, 1
      %p52 = scmp.eq.s32.totalorder %s14, 1
      %p53 = scmp.ne.s32.totalorder %s48, %s50
      %p54 = scmp.eq.s32.totalorder %s14, 0
      %p55 = por %p53, %p54
      %p56 = scmp.ne.s32.totalorder %s48, %s50
      %p57 = scmp.eq.s32.totalorder %s19, 1
      %p58 = por %p56, %p57
      %p59 = scmp.ne.s32.totalorder %s50, %s51
      %p60 = scmp.eq.s32.totalorder %s19, 0
      %p61 = por %p59, %p60
      %p62 = scmp.ne.s32.totalorder %s50, %s51
      %p63 = scmp.eq.s32.totalorder %s20, 1
      %p64 = por %p62, %p63
      %p66 = scmp.ne.s32.totalorder %s51, %s65
      %p67 = scmp.eq.s32.totalorder %s20, 0
      %p68 = por %p66, %p67
      %s70 = sadd.s32 %s69, 1
      %p73 = scmp.eq.s32.totalorder %s14, 1
      %p74 = scmp.ne.s32.totalorder %s69, %s71
      %p75 = scmp.eq.s32.totalorder %s14, 0
      %p76 = por %p74, %p75
      %p77 = scmp.ne.s32.totalorder %s69, %s71
      %p78 = scmp.eq.s32.totalorder %s19, 1
      %p79 = por %p77, %p78
      %p80 = scmp.ne.s32.totalorder %s71, %s72
      %p81 = scmp.eq.s32.totalorder %s19, 0
      %p82 = por %p80, %p81
      %p83 = scmp.ne.s32.totalorder %s71, %s72
      %p84 = scmp.eq.s32.totalorder %s20, 1
      %p85 = por %p83, %p84
      %p87 = scmp.ne.s32.totalorder %s72, %s86
      %p88 = scmp.eq.s32.totalorder %s20, 0
      %p89 = por %p87, %p88
      %s91 = sadd.s32 %s90, 1
      %p94 = scmp.eq.s32.totalorder %s14, 1
      %p95 = scmp.ne.s32.totalorder %s90, %s92
      %p96 = scmp.eq.s32.totalorder %s14, 0
      %p97 = por %p95, %p96
      %p98 = scmp.ne.s32.totalorder %s90, %s92
      %p99 = scmp.eq.s32.totalorder %s19, 1
      %p100 = por %p98, %p99
      %p101 = scmp.ne.s32.totalorder %s92, %s93
      %p102 = scmp.eq.s32.totalorder %s19, 0
      %p103 = por %p101, %p102
      %p104 = scmp.ne.s32.totalorder %s92, %s93
      %p105 = scmp.eq.s32.totalorder %s20, 1
      %p106 = por %p104, %p105
      %p108 = scmp.ne.s32.totalorder %s93, %s107
      %p109 = scmp.eq.s32.totalorder %s20, 0
      %p110 = por %p108, %p109
      %s112 = sadd.s32 %s111, 1
      %p115 = scmp.eq.s32.totalorder %s14, 1
      %p116 = scmp.ne.s32.totalorder %s111, %s113
      %p117 = scmp.eq.s32.totalorder %s14, 0
      %p118 = por %p116, %p117
      %p119 = scmp.ne.s32.totalorder %s111, %s113
      %p120 = scmp.eq.s32.totalorder %s19, 1
      %p121 = por %p119, %p120
      %p122 = scmp.ne.s32.totalorder %s113, %s114
      %p123 = scmp.eq.s32.totalorder %s19, 0
      %p124 = por %p122, %p123
      %p125 = scmp.ne.s32.totalorder %s113, %s114
      %p126 = scmp.eq.s32.totalorder %s20, 1
      %p127 = por %p125, %p126
      %p129 = scmp.ne.s32.totalorder %s114, %s128
      %p130 = scmp.eq.s32.totalorder %s20, 0
      %p131 = por %p129, %p130
      %s132 = ssub.s32 %s14, %s21
      %p133 = scmp.eq.s32.totalorder %s132, 0
      %s135 = sadd.s32 %s134, 1
      %s136 = scalar_select %p133, %s134, %s135
      %p139 = pneg %p133
      %p140 = scmp.eq.s32.totalorder %s14, 1
      %p141 = por %p139, %p140
      %p142 = scmp.ne.s32.totalorder %s134, %s137
      %p143 = scmp.eq.s32.totalorder %s14, 0
      %p144 = por %p142, %p143
      %p145 = scmp.ne.s32.totalorder %s134, %s137
      %p146 = scmp.eq.s32.totalorder %s19, 1
      %p147 = por %p145, %p146
      %p148 = scmp.ne.s32.totalorder %s137, %s138
      %p149 = scmp.eq.s32.totalorder %s19, 0
      %p150 = por %p148, %p149
      %p151 = scmp.ne.s32.totalorder %s137, %s138
      %p152 = scmp.eq.s32.totalorder %s20, 1
      %p153 = por %p151, %p152
      %p155 = scmp.ne.s32.totalorder %s138, %s154
      %p156 = scmp.eq.s32.totalorder %s20, 0
      %p157 = por %p155, %p156
      %p158 = scmp.le.s32.totalorder 1, %s14
      %p159 = scmp.lt.s32.totalorder %s14, 3
      %p160 = pnand %p158, %p159
      %p161 = pneg %p160
      // Predicated region
      $region9: #{tpu_custom_call.1} parent=5 // pred_check
        _
      $region10: #{tpu_custom_call.1} parent=5 // pred_check_branch
        %163 = sbr.rel (%p160) target = $region12
      $region11: #{tpu_custom_call.1} parent=5 // pred_region
        %s164 = ssub.s32 %s14, 1
        // Predicated region
        $region13: #{tpu_custom_call.1} parent=11 // pred_check
          %p165 = pneg %p61
        $region14: #{tpu_custom_call.1} parent=11 // pred_check_branch
          %167 = sbr.rel (%p165) target = $region16
        $region15: #{tpu_custom_call.1} parent=11 // pred_region
          _
        $region16: #{tpu_custom_call.1} parent=11 // pred_fallthru
          _
        // Predicated region
        $region17: #{tpu_custom_call.1} parent=11 // pred_check
          %p168 = pneg %p82
        $region18: #{tpu_custom_call.1} parent=11 // pred_check_branch
          %170 = sbr.rel (%p168) target = $region20
        $region19: #{tpu_custom_call.1} parent=11 // pred_region
          _
        $region20: #{tpu_custom_call.1} parent=11 // pred_fallthru
          _
        // Predicated region
        $region21: #{tpu_custom_call.1} parent=11 // pred_check
          %p171 = pneg %p103
        $region22: #{tpu_custom_call.1} parent=11 // pred_check_branch
          %173 = sbr.rel (%p171) target = $region24
        $region23: #{tpu_custom_call.1} parent=11 // pred_region
          _
        $region24: #{tpu_custom_call.1} parent=11 // pred_fallthru
          _
        // Predicated region
        $region25: #{tpu_custom_call.1} parent=11 // pred_check
          %p174 = pneg %p124
        $region26: #{tpu_custom_call.1} parent=11 // pred_check_branch
          %176 = sbr.rel (%p174) target = $region28
        $region27: #{tpu_custom_call.1} parent=11 // pred_region
          _
        $region28: #{tpu_custom_call.1} parent=11 // pred_fallthru
          _
      $region12: #{tpu_custom_call.1} parent=5 // pred_fallthru
        _
      %p177 = scmp.lt.s32.totalorder %s14, 2
      // Predicated region
      $region29: #{tpu_custom_call.1} parent=5 // pred_check
        %p178 = pneg %p177
      $region30: #{tpu_custom_call.1} parent=5 // pred_check_branch
        %180 = sbr.rel (%p178) target = $region32
      $region31: #{tpu_custom_call.1} parent=5 // pred_region
        // Predicated region
        $region33: #{tpu_custom_call.1} parent=31 // pred_check
          %p181 = pneg %p34
        $region34: #{tpu_custom_call.1} parent=31 // pred_check_branch
          %183 = sbr.rel (%p181) target = $region36
        $region35: #{tpu_custom_call.1} parent=31 // pred_region
          %p184 = scmp.lt.s32.totalorder %s14, 1
          %s185 = scalar_select %p184, %s14, 1
          %s186 = smul.addr %s185, 2
          %s187 = smul.addr %s186, 4
          %s188 = scalar_lea.vmem %s0, %s187
        $region36: #{tpu_custom_call.1} parent=31 // pred_fallthru
          _
      $region32: #{tpu_custom_call.1} parent=5 // pred_fallthru
        _
      %p189 = scmp.le.s32.totalorder 1, %s14
      %p190 = scmp.lt.s32.totalorder %s14, 3
      %p191 = pnand %p189, %p190
      %p192 = pneg %p191
      // Predicated region
      $region37: #{tpu_custom_call.1} parent=5 // pred_check
        _
      $region38: #{tpu_custom_call.1} parent=5 // pred_check_branch
        %194 = sbr.rel (%p191) target = $region40
      $region39: #{tpu_custom_call.1} parent=5 // pred_region
        %s195 = ssub.s32 %s14, 1
        %p196 = scmp.lt.s32.totalorder %s19, 1
        %s197 = scalar_select %p196, %s19, 1
        %s198 = smul.addr %s197, 2
        %s199 = smul.addr %s198, 4
        %s200 = scalar_lea.vmem %s0, %s199
        %p201 = pneg %p40
        %p202 = pneg %p37
        %p203 = pneg %p61
        %p204 = pneg %p58
        %p205 = pneg %p82
        %p206 = pneg %p79
        %p207 = pneg %p103
        %p208 = pneg %p100
        %p209 = pneg %p124
        %p210 = pneg %p121
        %p211 = pneg %p150
        %p212 = pneg %p147
        %s213 = sand.u32 %s137, 1
        %s214 = scalar_lea.sflag [#allocation4], %s213
        %s215 = sand.u32 %s137, 1
        %s216 = smul.addr %s215, 16
        %s217 = scalar_lea.vmem [#allocation3], %s216
        %p218 = scmp.lt.s32.totalorder %s19, 1
        %s219 = scalar_select %p218, %s19, 1
        %s220 = smul.addr %s219, 2
        %s221 = smul.addr %s220, 4
        %s222 = scalar_lea.vmem %s0, %s221
        %v223 = vld [vmem:[%s1] sm:$0xff]
        %v224 = vld [vmem:[%s222] sm:$0xff]
        %226 = vset.pattern.permute.xlu0 0
        %227 = vperm.xlu0 %226, %v223
        %v228 = vpop.permute.xlu0 %227
        %v231 = vperm.slane %v224, 0
        %v232 = vperm.slane %v224, 4
        %v235 = vperm.slane %v231, 0
        %v236 = vperm.slane %v232, 0
        %v237 = vmul.f32 %v228, %v235
        %v238 = vmul.f32 %v228, %v236
        %239 = vset.pattern.permute.xlu0 1
        %240 = vperm.xlu0 %239, %v223
        %v241 = vpop.permute.xlu0 %240
        %v243 = vperm.slane %v224, 1
        %v244 = vperm.slane %v224, 5
        %v247 = vperm.slane %v243, 1
        %v248 = vperm.slane %v244, 1
        %v249 = vmul.f32 %v241, %v247
        %v250 = vmul.f32 %v241, %v248
        %v251 = vadd.f32 %v237, %v249
        %v252 = vadd.f32 %v238, %v250
        %253 = vset.pattern.permute.xlu0 2
        %254 = vperm.xlu0 %253, %v223
        %v255 = vpop.permute.xlu0 %254
        %v257 = vperm.slane %v224, 2
        %v258 = vperm.slane %v224, 6
        %v261 = vperm.slane %v257, 2
        %v262 = vperm.slane %v258, 2
        %v263 = vmul.f32 %v255, %v261
        %v264 = vmul.f32 %v255, %v262
        %v265 = vadd.f32 %v251, %v263
        %v266 = vadd.f32 %v252, %v264
        %267 = vset.pattern.permute.xlu0 3
        %268 = vperm.xlu0 %267, %v223
        %v269 = vpop.permute.xlu0 %268
        %v271 = vperm.slane %v224, 3
        %v272 = vperm.slane %v224, 7
        %v275 = vperm.slane %v271, 3
        %v276 = vperm.slane %v272, 3
        %v277 = vmul.f32 %v269, %v275
        %v278 = vmul.f32 %v269, %v276
        %v279 = vadd.f32 %v265, %v277
        %v280 = vadd.f32 %v266, %v278
        %v281 = vld [vmem:[%s2] sm:$0xff]
        %283 = vset.pattern.permute.xlu0 0
        %284 = vperm.xlu0 %283, %v281
        %v285 = vpop.permute.xlu0 %284
        %v287 = vadd.f32 %v279, %v285
        %v288 = vadd.f32 %v280, %v285
        %v289 = vmul.f32 %v287, 0.01
        %v290 = vmul.f32 %v288, 0.01
        %v291 = vmax.f32 %v287, %v289
        %v292 = vmax.f32 %v288, %v290
        %293 = vst [vmem:[#allocation2] sm:$0xff] 0.0
        %294 = vst [vmem:[#allocation2 + $0x18] sm:$0xff] 0.0
        %295 = vst [vmem:[#allocation2 + $0x8] sm:$0xff] %v291
        %296 = vst [vmem:[#allocation2 + $0x10] sm:$0xff] %v292
        %v297 = vld [vmem:[%s3] sm:$0xff]
        %v298 = vlaneseq
        %v299 = vand.u32 %v298, 127
        %v300 = vadd.s32 %v299, 128
        %vm301 = vcmp.lt.s32.totalorder %v299, 0
        %v302 = vsub.s32 0, %v299
        %v303 = vsel %vm301, %v302, %v299
        %v304 = vshrl.u32 %v303, 4
        %v305 = vand.u32 %v303, 15
        %v306 = vsub.s32 0, %v305
        %v307 = vsel %vm301, %v306, %v305
        %vm308 = vcmp.lt.s32.totalorder %v300, 0
        %v309 = vsub.s32 0, %v300
        %v310 = vsel %vm308, %v309, %v300
        %v311 = vshrl.u32 %v310, 4
        %v312 = vand.u32 %v310, 15
        %v313 = vsub.s32 0, %v312
        %v314 = vsel %vm308, %v313, %v312
        %vm315 = vcmp.ne.s32.totalorder %v307, 0
        %vm316 = vcmp.ne.s32.totalorder %v314, 0
        %vm317 = vcmp.lt.s32.totalorder %v307, 0
        %vm318 = vcmp.lt.s32.totalorder %v314, 0
        %vm319 = vmand %vm317, %vm315
        %vm320 = vmand %vm318, %vm316
        %v321 = vadd.s32 %v307, 16
        %v322 = vadd.s32 %v314, 16
        %v323 = vsel %vm319, %v321, %v307
        %v324 = vsel %vm320, %v322, %v314
        %v325 = vld [vmem:[#allocation2] sm:$0xff]
        %v326 = vld [vmem:[#allocation2 + $0x8] sm:$0xff]
        %v327 = vld [vmem:[#allocation2 + $0x10] sm:$0xff]
        %329 = vset.pattern.permute.xlu0 0
        %330 = vperm.xlu0 %329, %v297
        %v331 = vpop.permute.xlu0 %330
        %v333 = vmul.f32 %v331, %v325
        %v334 = vmul.f32 %v331, %v326
        %v335 = vmul.f32 %v331, %v327
        %336 = vset.pattern.permute.xlu0 3
        %337 = vperm.xlu0 %336, %v297
        %v338 = vpop.permute.xlu0 %337
        %v340 = vmul.f32 %v338, %v325
        %v341 = vmul.f32 %v338, %v326
        %v342 = vmul.f32 %v338, %v327
        %346 = vrot.lane.b32.xlu0 %v340, 112
        %v347 = vpop.permute.xlu0 %346
        %348 = vrot.lane.b32.xlu0 %v341, 112
        %v349 = vpop.permute.xlu0 %348
        %350 = vrot.lane.b32.xlu0 %v342, 112
        %v351 = vpop.permute.xlu0 %350
        %vm352 = vcmask 916480
        %v353 = vsel %vm352, %v347, %v349
        %v354 = vsel %vm352, %v349, %v351
        %v358 = vadd.f32 %v333, %v353
        %v359 = vadd.f32 %v334, %v354
        %v360 = vadd.f32 %v335, %v351
        %v361 = vld [vmem:[#allocation2 + $0x8] sm:$0xff]
        %v362 = vld [vmem:[#allocation2 + $0x10] sm:$0xff]
        %v363 = vld [vmem:[#allocation2 + $0x18] sm:$0xff]
        %364 = vset.pattern.permute.xlu0 6
        %365 = vperm.xlu0 %364, %v297
        %v366 = vpop.permute.xlu0 %365
        %v368 = vmul.f32 %v366, %v361
        %v369 = vmul.f32 %v366, %v362
        %v370 = vmul.f32 %v366, %v363
        %374 = vrot.lane.b32.xlu0 %v368, 96
        %v375 = vpop.permute.xlu0 %374
        %376 = vrot.lane.b32.xlu0 %v369, 96
        %v377 = vpop.permute.xlu0 %376
        %378 = vrot.lane.b32.xlu0 %v370, 96
        %v379 = vpop.permute.xlu0 %378
        %vm380 = vcmask 785408
        %v381 = vsel %vm380, %v375, %v377
        %v382 = vsel %vm380, %v377, %v379
        %v386 = vadd.f32 %v358, %v375
        %v387 = vadd.f32 %v359, %v381
        %v388 = vadd.f32 %v360, %v382
        %vm389 = vcmp.ge.s32.totalorder %v323, 1
        %vm390 = vcmp.ge.s32.totalorder %v324, 1
        %v391 = vsel %vm389, 1, 0
        %v392 = vsel %vm390, 1, 0
        %vm393 = vcmp.eq.s32.totalorder %v391, 1
        %vm394 = vcmp.eq.s32.totalorder %v392, 1
        %398 = vrot.lane.b32.xlu0 %v386, 17
        %v399 = vpop.permute.xlu0 %398
        %400 = vrot.lane.b32.xlu0 %v387, 17
        %v401 = vpop.permute.xlu0 %400
        %402 = vrot.lane.b32.xlu0 %v388, 17
        %v403 = vpop.permute.xlu0 %402
        %vm404 = vcmask 138240
        %v405 = vsel %vm404, %v399, %v401
        %v406 = vsel %vm404, %v401, %v403
        %v409 = vsel %vm393, %v405, 0.0
        %v410 = vsel %vm394, %v406, 0.0
        %411 = vset.pattern.permute.xlu0 1
        %412 = vperm.xlu0 %411, %v297
        %v413 = vpop.permute.xlu0 %412
        %v415 = vmul.f32 %v413, %v325
        %v416 = vmul.f32 %v413, %v326
        %v417 = vmul.f32 %v413, %v327
        %418 = vset.pattern.permute.xlu0 4
        %419 = vperm.xlu0 %418, %v297
        %v420 = vpop.permute.xlu0 %419
        %v422 = vmul.f32 %v420, %v326
        %v423 = vmul.f32 %v420, %v327
        %426 = vrot.lane.b32.xlu0 %v422, 112
        %v427 = vpop.permute.xlu0 %426
        %428 = vrot.lane.b32.xlu0 %v423, 112
        %v429 = vpop.permute.xlu0 %428
        %v430 = vsel %vm352, %v427, %v429
        %v434 = vadd.f32 %v415, %v427
        %v435 = vadd.f32 %v416, %v430
        %v436 = vadd.f32 %v417, %v429
        %437 = vset.pattern.permute.xlu0 7
        %438 = vperm.xlu0 %437, %v297
        %v439 = vpop.permute.xlu0 %438
        %v441 = vmul.f32 %v439, %v361
        %v442 = vmul.f32 %v439, %v362
        %v443 = vmul.f32 %v439, %v363
        %447 = vrot.lane.b32.xlu0 %v441, 96
        %v448 = vpop.permute.xlu0 %447
        %449 = vrot.lane.b32.xlu0 %v442, 96
        %v450 = vpop.permute.xlu0 %449
        %451 = vrot.lane.b32.xlu0 %v443, 96
        %v452 = vpop.permute.xlu0 %451
        %v453 = vsel %vm380, %v448, %v450
        %v454 = vsel %vm380, %v450, %v452
        %v458 = vadd.f32 %v434, %v448
        %v459 = vadd.f32 %v435, %v453
        %v460 = vadd.f32 %v436, %v454
        %464 = vrot.lane.b32.xlu0 %v458, 16
        %v465 = vpop.permute.xlu0 %464
        %466 = vrot.lane.b32.xlu0 %v459, 16
        %v467 = vpop.permute.xlu0 %466
        %468 = vrot.lane.b32.xlu0 %v460, 16
        %v469 = vpop.permute.xlu0 %468
        %vm470 = vcmask 130048
        %v471 = vsel %vm470, %v465, %v467
        %v472 = vsel %vm470, %v467, %v469
        %v475 = vadd.f32 %v409, %v471
        %v476 = vadd.f32 %v410, %v472
        %477 = vset.pattern.permute.xlu0 2
        %478 = vperm.xlu0 %477, %v297
        %v479 = vpop.permute.xlu0 %478
        %v481 = vmul.f32 %v479, %v325
        %v482 = vmul.f32 %v479, %v326
        %v483 = vmul.f32 %v479, %v327
        %484 = vset.pattern.permute.xlu0 5
        %485 = vperm.xlu0 %484, %v297
        %v486 = vpop.permute.xlu0 %485
        %v488 = vmul.f32 %v486, %v361
        %v489 = vmul.f32 %v486, %v362
        %v490 = vmul.f32 %v486, %v363
        %494 = vrot.lane.b32.xlu0 %v488, 112
        %v495 = vpop.permute.xlu0 %494
        %496 = vrot.lane.b32.xlu0 %v489, 112
        %v497 = vpop.permute.xlu0 %496
        %498 = vrot.lane.b32.xlu0 %v490, 112
        %v499 = vpop.permute.xlu0 %498
        %v500 = vsel %vm352, %v495, %v497
        %v501 = vsel %vm352, %v497, %v499
        %v505 = vadd.f32 %v481, %v495
        %v506 = vadd.f32 %v482, %v500
        %v507 = vadd.f32 %v483, %v501
        %508 = vset.pattern.permute.xlu0 8
        %509 = vperm.xlu0 %508, %v297
        %v510 = vpop.permute.xlu0 %509
        %v512 = vmul.f32 %v510, %v361
        %v513 = vmul.f32 %v510, %v362
        %v514 = vmul.f32 %v510, %v363
        %518 = vrot.lane.b32.xlu0 %v512, 96
        %v519 = vpop.permute.xlu0 %518
        %520 = vrot.lane.b32.xlu0 %v513, 96
        %v521 = vpop.permute.xlu0 %520
        %522 = vrot.lane.b32.xlu0 %v514, 96
        %v523 = vpop.permute.xlu0 %522
        %v524 = vsel %vm380, %v519, %v521
        %v525 = vsel %vm380, %v521, %v523
        %v529 = vadd.f32 %v505, %v519
        %v530 = vadd.f32 %v506, %v524
        %v531 = vadd.f32 %v507, %v525
        %vm532 = vcmp.lt.s32.totalorder %v323, 15
        %vm533 = vcmp.lt.s32.totalorder %v324, 15
        %v534 = vsel %vm532, 1, 0
        %v535 = vsel %vm533, 1, 0
        %vm536 = vcmp.eq.s32.totalorder %v534, 1
        %vm537 = vcmp.eq.s32.totalorder %v535, 1
        %541 = vrot.lane.b32.xlu0 %v529, 15
        %v542 = vpop.permute.xlu0 %541
        %543 = vrot.lane.b32.xlu0 %v530, 15
        %v544 = vpop.permute.xlu0 %543
        %545 = vrot.lane.b32.xlu0 %v531, 15
        %v546 = vpop.permute.xlu0 %545
        %vm547 = vcmask 121856
        %v548 = vsel %vm547, %v542, %v544
        %v549 = vsel %vm547, %v544, %v546
        %v552 = vsel %vm536, %v548, 0.0
        %v553 = vsel %vm537, %v549, 0.0
        %v554 = vadd.f32 %v475, %v552
        %v555 = vadd.f32 %v476, %v553
        %v556 = vld [vmem:[%s4] sm:$0xff]
        %558 = vset.pattern.permute.xlu0 0
        %559 = vperm.xlu0 %558, %v556
        %v560 = vpop.permute.xlu0 %559
        %v562 = vadd.f32 %v554, %v560
        %v563 = vadd.f32 %v555, %v560
        %v564 = vmul.f32 %v562, 0.01
        %v565 = vmul.f32 %v563, 0.01
        %v566 = vmax.f32 %v562, %v564
        %v567 = vmax.f32 %v563, %v565
        %568 = vst [vmem:[%s217] sm:$0xff] %v566
        %569 = vst [vmem:[%s217 + $0x8] sm:$0xff] %v567
        %s570 = sand.u32 %s137, 1
        %s571 = scalar_lea.sflag [#allocation4], %s570
        %s572 = sand.u32 %s137, 1
        %s573 = smul.addr %s572, 16
        %s574 = scalar_lea.vmem [#allocation3], %s573
        // Predicated region
        $region41: #{tpu_custom_call.1} parent=39 // pred_check
          %p575 = pneg %p147
        $region42: #{tpu_custom_call.1} parent=39 // pred_check_branch
          %577 = sbr.rel (%p575) target = $region44
        $region43: #{tpu_custom_call.1} parent=39 // pred_region
          %579 = vsyncadd %s571, 0
          %s580 = smul.addr %s19, 2
          %s581 = smul.addr %s580, 8
          %s582 = scalar_lea.hbm %s5, %s581
          %s584 = sshll.u32 %s574, 4
          %s585 = int_to_ptr.vmem [resolvable:$true] %s584
          %s586 = sshll.u32 %s582, 4
          %s587 = int_to_ptr.hbm [resolvable:$true] %s586
          %589 = dma.vmem_to_hbm [thread:$0]  %s585, 256, %s587, %s571
        $region44: #{tpu_custom_call.1} parent=39 // pred_fallthru
          _
      $region40: #{tpu_custom_call.1} parent=5 // pred_fallthru
        _
      %p590 = scmp.le.s32.totalorder 2, %s14
      // Predicated region
      $region45: #{tpu_custom_call.1} parent=5 // pred_check
        %p591 = pneg %p590
      $region46: #{tpu_custom_call.1} parent=5 // pred_check_branch
        %593 = sbr.rel (%p591) target = $region48
      $region47: #{tpu_custom_call.1} parent=5 // pred_region
        %s594 = ssub.s32 %s14, 2
        // Predicated region
        $region49: #{tpu_custom_call.1} parent=47 // pred_check
          %p595 = pneg %p153
        $region50: #{tpu_custom_call.1} parent=47 // pred_check_branch
          %597 = sbr.rel (%p595) target = $region52
        $region51: #{tpu_custom_call.1} parent=47 // pred_region
          %s598 = sand.u32 %s138, 1
          %s599 = scalar_lea.sflag [#allocation4], %s598
          %s600 = sand.u32 %s138, 1
          %s601 = smul.addr %s600, 16
          %s602 = scalar_lea.vmem [#allocation3], %s601
          %604 = dma.done %s599, 256
        $region52: #{tpu_custom_call.1} parent=47 // pred_fallthru
          _
      $region48: #{tpu_custom_call.1} parent=5 // pred_fallthru
        _
    $region6: #{tpu_custom_call.1} parent=1 // loop_footer
      %s18 = sadd.s32 1, %s14
    $region7: #{tpu_custom_call.1} parent=1 // loop_footer_branch
      %13 = sbr.rel target = $region3
    $region8: #{tpu_custom_call.1} parent=1 // loop_exit
      _
    %605 = vsyncpa [#allocation4], 1
    %s606 = scalar_lea.sflag [#allocation4], 1
    %607 = vsyncpa %s606, 1

</llo_original>
